<compile_context>
chip_gen: v6e
topology: v6e:2x2x1
jax: 0.10.0
libtpu: 0.0.40
codegen_flags: <defaults>
</compile_context>

<pallas_src>
import jax
import jax.numpy as jnp
from jax.experimental import pallas as pl
from jax.experimental.pallas import tpu as pltpu

_LANE = 128
_NEG_BIG = -1e30  # effectively -inf for padded logit columns (keeps math finite)


def _round_up(v, m):
    return (v + m - 1) // m * m


def _categorical_logits_kernel(x_ref, wt_ref, b_ref, logits_ref):
    """Fused linear + stable log-softmax.

    x:  (TB, Din)        native dtype (f32 or bf16)
    wt: (Din, Dout_pad)  same dtype as x (pre-transposed + lane-padded)
    b:  (1, Dout_pad)    f32; padded columns hold _NEG_BIG
    out: (TB, Dout_pad)  f32 normalized logits (logits - logsumexp)
    """
    # MXU matmul with f32 accumulation regardless of operand dtype.
    y = jnp.dot(x_ref[...], wt_ref[...], preferred_element_type=jnp.float32)
    y = y + b_ref[...]                         # bias add in f32
    # Stable log-softmax; all elementwise math in f32 (v5e has no bf16 VPU/EUP).
    m = jnp.max(y, axis=-1, keepdims=True)
    e = jnp.exp(y - m)
    s = jnp.sum(e, axis=-1, keepdims=True)
    logits_ref[...] = y - (m + jnp.log(s))
    # NOTE: probs is intentionally NOT materialized here -- it is exactly
    # exp(logits) and is computed lazily by the consumer only if requested.


def prepare_linear_params(weight, bias, param_dtype=jnp.float32):
    """One-time prep of the PyTorch-layout (Dout, Din) linear params.

    Returns (wt_padded, b_padded, num_outputs):
      wt_padded: (Din, Dout_pad) in `param_dtype` (bf16 halves weight DMA and
                 runs the MXU at native bf16 rate on all generations).
      b_padded:  (1, Dout_pad) f32; padded columns hold _NEG_BIG so the padded
                 logits are ~ -inf and no output slicing is needed downstream.
    """
    dout, din = weight.shape
    dout_pad = _round_up(dout, _LANE)
    wt = jnp.zeros((din, dout_pad), jnp.float32).at[:, :dout].set(
        jnp.asarray(weight, jnp.float32).T).astype(param_dtype)
    b = jnp.full((1, dout_pad), _NEG_BIG, jnp.float32).at[0, :dout].set(
        jnp.asarray(bias, jnp.float32))
    return wt, b, dout


def categorical_net_forward(x, wt_padded, b_padded, *, batch_tile=1024,
                            core_parallel=False):
    """Fused linear + Categorical normalization.

    x: (B, Din), consumed in its native dtype (never copied/cast in the wrapper).
    Returns PADDED normalized logits of shape (B, Dout_pad) float32; padded
    columns hold ~ -inf and are harmless for argmax / sampling / gather.
    """
    B, din = x.shape
    dout_pad = wt_padded.shape[1]
    # Match the (tiny) weight to x's dtype instead of casting x, which would
    # materialize an extra full-size HBM copy of the activations.
    if wt_padded.dtype != x.dtype:
        wt_padded = wt_padded.astype(x.dtype)

    cost = pl.CostEstimate(
        flops=2 * B * din * dout_pad,
        transcendentals=B * dout_pad,
        bytes_accessed=int(x.size * x.dtype.itemsize
                           + wt_padded.size * wt_padded.dtype.itemsize
                           + b_padded.size * 4
                           + B * dout_pad * 4),
    )

    if B <= batch_tile:
        # Small batch: single block, no grid (no pipeline prologue/epilogue).
        return pl.pallas_call(
            _categorical_logits_kernel,
            out_shape=jax.ShapeDtypeStruct((B, dout_pad), jnp.float32),
            in_specs=[
                pl.BlockSpec(memory_space=pltpu.MemorySpace.VMEM),
                pl.BlockSpec(memory_space=pltpu.MemorySpace.VMEM),
                pl.BlockSpec(memory_space=pltpu.MemorySpace.VMEM),
            ],
            out_specs=pl.BlockSpec(memory_space=pltpu.MemorySpace.VMEM),
            cost_estimate=cost,
        )(x, wt_padded, b_padded)

    # Large batch: tile only B.  grid = cdiv(B, tb) -> the ragged last block is
    # masked by Pallas on writeback, so no wrapper-side batch-pad copy is done.
    tb = batch_tile
    grid = (pl.cdiv(B, tb),)

    # VMEM budget: double-buffered x/out blocks + weight/bias residency,
    # clamped below v7x's 64 MiB physical VMEM.  On v5e/v6e (128 MiB physical)
    # batch_tile of 1024-2048 amortizes per-grid-step overhead.
    need = (2 * tb * din * x.dtype.itemsize
            + 2 * tb * dout_pad * 4
            + 2 * (din * dout_pad * wt_padded.dtype.itemsize + dout_pad * 4))
    vmem_limit = int(min(max(2 * need, 32 << 20), 48 << 20))
    # TODO(synk): on v7x pass core_parallel=True to shard the batch axis across
    # both TensorCores; kept opt-in since v5e/v6e have a single TC.
    dim_sem = (pltpu.CORE_PARALLEL,) if core_parallel else ("parallel",)

    return pl.pallas_call(
        _categorical_logits_kernel,
        out_shape=jax.ShapeDtypeStruct((B, dout_pad), jnp.float32),
        grid_spec=pl.GridSpec(
            grid=grid,
            in_specs=[
                pl.BlockSpec((tb, din), lambda i: (i, 0)),
                # Weight/bias index_maps are grid-invariant -> VMEM resident
                # across steps.  Bytes are tiny here; for very large Din*Dout,
                # single-buffer them (pipeline_mode=pl.Buffered(1)) and/or add
                # a Dout-tiled online-softmax path.
                pl.BlockSpec((din, dout_pad), lambda i: (0, 0)),
                pl.BlockSpec((1, dout_pad), lambda i: (0, 0)),
            ],
            out_specs=pl.BlockSpec((tb, dout_pad), lambda i: (i, 0)),
        ),
        compiler_params=pltpu.CompilerParams(
            dimension_semantics=dim_sem,
            vmem_limit_bytes=vmem_limit,
        ),
        cost_estimate=cost,
    )(x, wt_padded, b_padded)


class CustomFixedCategorical:
    """JAX-side CustomFixedCategorical built on the kernel's padded logits.

    Holds the padded (B, Dout_pad) normalized logits; padded columns are
    ~ -inf, so mode/log_prob/sample operate on them directly with no extra
    HBM slice pass.  `.logits` / `.probs` slice (and exponentiate) lazily.
    """

    def __init__(self, padded_logits, num_outputs):
        self._padded_logits = padded_logits
        self._num_outputs = num_outputs

    @property
    def logits(self):
        return self._padded_logits[:, :self._num_outputs]

    @property
    def probs(self):
        # probs == exp(normalized logits); never materialized by the kernel.
        return jnp.exp(self.logits)

    def mode(self):
        # Padded columns ~ -inf -> argmax always lands in [0, num_outputs).
        return jnp.argmax(self._padded_logits, axis=-1, keepdims=True)

    def log_prob(self, actions):
        a = jnp.squeeze(actions, axis=-1)
        lp = jnp.take_along_axis(self._padded_logits, a[:, None], axis=-1)
        return lp.reshape(actions.shape[0], -1).sum(-1)[:, None]

    def sample(self, key):
        # TODO(synk): torch.distributions sampling machinery has no in-kernel
        # equivalent; use jax.random.categorical on the normalized logits
        # (padded columns have prob ~0 and are never drawn).
        s = jax.random.categorical(key, self._padded_logits, axis=-1)
        return s[:, None]


class CategoricalNet:
    def __init__(self, num_inputs: int, num_outputs: int, key,
                 param_dtype=jnp.float32):
        # Orthogonal init, gain=0.01 (matches nn.init.orthogonal_); bias 0.
        a = jax.random.normal(key, (num_outputs, num_inputs), dtype=jnp.float32)
        q, r = jnp.linalg.qr(a.T)
        q = q * jnp.sign(jnp.diag(r))[None, :]
        self.weight = (0.01 * q.T).astype(jnp.float32)  # (num_outputs, num_inputs)
        self.bias = jnp.zeros((num_outputs,), jnp.float32)
        # One-time prep: transposed + lane-padded params in param_dtype.
        self.wt_padded, self.b_padded, self.num_outputs = prepare_linear_params(
            self.weight, self.bias, param_dtype)

    def __call__(self, x, *, batch_tile=1024, core_parallel=False):
        padded_logits = categorical_net_forward(
            x, self.wt_padded, self.b_padded,
            batch_tile=batch_tile, core_parallel=core_parallel)
        return CustomFixedCategorical(padded_logits, self.num_outputs)


def _reference(x, weight, bias):
    y = x.astype(jnp.float32) @ weight.T + bias[None, :]
    logz = jax.scipy.special.logsumexp(y, axis=-1, keepdims=True)
    ref_logits = y - logz
    return ref_logits, jnp.exp(ref_logits)


if __name__ == "__main__":
    key = jax.random.PRNGKey(0)
    k_w, k_x, k_x2, k_s = jax.random.split(key, 4)

    num_inputs, num_outputs = 32, 4
    net = CategoricalNet(num_inputs, num_outputs, k_w)

    # --- small batch (gridless single-block path), f32 ---
    B = 8
    x = jax.random.normal(k_x, (B, num_inputs), dtype=jnp.float32)
    dist = net(x)
    jax.block_until_ready(dist._padded_logits)

    ref_logits, ref_probs = _reference(x, net.weight, net.bias)
    assert dist.logits.shape == (B, num_outputs)
    assert jnp.allclose(dist.logits, ref_logits, atol=1e-4), "logits mismatch"
    assert jnp.allclose(dist.probs, ref_probs, atol=1e-4), "probs mismatch"
    assert jnp.allclose(dist.probs.sum(-1), 1.0, atol=1e-4), "probs not normalized"

    # --- batch-tiled grid path with a ragged last block (no pad copy) ---
    B2 = 40
    x2 = jax.random.normal(k_x2, (B2, num_inputs), dtype=jnp.float32)
    dist2 = net(x2, batch_tile=16)              # grid = cdiv(40, 16) = 3
    jax.block_until_ready(dist2._padded_logits)
    ref_logits2, ref_probs2 = _reference(x2, net.weight, net.bias)
    assert jnp.allclose(dist2.logits, ref_logits2, atol=1e-4), "tiled logits mismatch"
    assert jnp.allclose(dist2.probs, ref_probs2, atol=1e-4), "tiled probs mismatch"

    # --- bf16 activations + bf16 weight (native-dtype path, f32 accumulate) ---
    net_bf16 = CategoricalNet(num_inputs, num_outputs, k_w,
                              param_dtype=jnp.bfloat16)
    x_bf16 = x.astype(jnp.bfloat16)
    dist_bf = net_bf16(x_bf16)
    jax.block_until_ready(dist_bf._padded_logits)
    assert dist_bf._padded_logits.dtype == jnp.float32
    assert jnp.allclose(dist_bf.logits, ref_logits, atol=3e-2), "bf16 logits mismatch"
    assert jnp.allclose(dist_bf.probs.sum(-1), 1.0, atol=1e-3), "bf16 probs not normalized"

    # --- distribution helpers ---
    mode = dist.mode()
    lp = dist.log_prob(mode)
    smp = dist.sample(k_s)
    jax.block_until_ready((lp, smp))
    assert mode.shape == (B, 1) and lp.shape == (B, 1) and smp.shape == (B, 1)
    assert int(jnp.max(mode)) < num_outputs and int(jnp.max(smp)) < num_outputs

    print("KERNEL_OK")
</pallas_src>

<mosaic_0001>
module attributes {stable_mosaic.version = 11 : i64} {
  func.func @_categorical_logits_kernel(%arg0: memref<8x32xf32, #tpu.memory_space<vmem>>, %arg1: memref<32x128xf32, #tpu.memory_space<vmem>>, %arg2: memref<1x128xf32, #tpu.memory_space<vmem>>, %arg3: memref<8x128xf32, #tpu.memory_space<vmem>>) attributes {dimension_semantics = [], scalar_prefetch = 0 : i64, scratch_operands = 0 : i64, tpu.core_type = #tpu.core_type<tc>} {
    %c0 = arith.constant 0 : index
    %c0_0 = arith.constant 0 : index
    %0 = vector.load %arg0[%c0, %c0_0] : memref<8x32xf32, #tpu.memory_space<vmem>>, vector<8x32xf32>
    %c0_1 = arith.constant 0 : index
    %c0_2 = arith.constant 0 : index
    %1 = vector.load %arg1[%c0_1, %c0_2] : memref<32x128xf32, #tpu.memory_space<vmem>>, vector<32x128xf32>
    %cst = arith.constant dense<0.000000e+00> : vector<8x128xf32>
    %2 = tpu.matmul %0, %1, %cst {dimension_numbers = #tpu.dot_dimension_numbers<[1], [0], [0], [1], [0, 0, 1, 1], [], []>} : vector<8x32xf32>, vector<32x128xf32>, vector<8x128xf32> -> vector<8x128xf32>
    %c0_3 = arith.constant 0 : index
    %c0_4 = arith.constant 0 : index
    %3 = vector.load %arg2[%c0_3, %c0_4] : memref<1x128xf32, #tpu.memory_space<vmem>>, vector<1x128xf32>
    %4 = vector.broadcast %3 : vector<1x128xf32> to vector<8x128xf32>
    %5 = arith.addf %2, %4 : vector<8x128xf32>
    %cst_5 = arith.constant dense<0xFF800000> : vector<8xf32>
    %6 = vector.multi_reduction <maximumf>, %5, %cst_5 [1] : vector<8x128xf32> to vector<8xf32>
    %7 = vector.shape_cast %6 : vector<8xf32> to vector<8x1xf32>
    %8 = vector.broadcast %7 : vector<8x1xf32> to vector<8x128xf32>
    %9 = arith.subf %5, %8 : vector<8x128xf32>
    %10 = math.exp %9 : vector<8x128xf32>
    %cst_6 = arith.constant dense<0.000000e+00> : vector<8xf32>
    %11 = vector.multi_reduction <add>, %10, %cst_6 [1] : vector<8x128xf32> to vector<8xf32>
    %12 = vector.shape_cast %11 : vector<8xf32> to vector<8x1xf32>
    %13 = math.log %12 : vector<8x1xf32>
    %14 = arith.addf %7, %13 : vector<8x1xf32>
    %15 = vector.broadcast %14 : vector<8x1xf32> to vector<8x128xf32>
    %16 = arith.subf %5, %15 : vector<8x128xf32>
    %c0_7 = arith.constant 0 : index
    %c0_8 = arith.constant 0 : index
    %17 = vector.load %arg3[%c0_7, %c0_8] : memref<8x128xf32, #tpu.memory_space<vmem>>, vector<8x128xf32>
    tpu.vector_store %arg3[%c0_7, %c0_8], %16 {strides = array<i32>} : memref<8x128xf32, #tpu.memory_space<vmem>>, vector<8x128xf32>,
    return
  }
}

</mosaic_0001>

<llo_original>
// kernel: tpu_custom_call.1
$region0: #{tpu_custom_call.1}
  #allocation0 [shape = 'u32[]', space=smem, size = 0x4, offset = 0x4, fixed_abs, tag = 'smem constant byte address 0x4 - core index']
  #allocation1 [shape = 'u32[144,128]{1,0:T(1,128)}', space=vmem, size = 0x12000, scoped, tag = 'internal scratch']
  %s0 = inlined_call_operand.hbm [shape: f32[8,32], index: 0, kind: input, shape index: {}]
  %s1 = inlined_call_operand.hbm [shape: f32[32,128], index: 1, kind: input, shape index: {}]
  %s2 = inlined_call_operand.vmem [shape: f32[1,128], index: 2, kind: input, shape index: {}]
  %s3 = inlined_call_operand.hbm [shape: f32[8,128], index: 3, kind: output, shape index: {}]
  %s4 = sld [smem:[#allocation0]]
  $region30: #{tpu_custom_call.1} parent=0
    _
  %s6 = ssub.s32 1, %s4
  %s7 = scalar_select 0, %s6, %s4
  $region1: #{tpu_custom_call.1} parent=0
    #allocation2 [shape = 'u8[4096]{0}', space=vmem, size = 0x1000, scoped, tag = 'input window, operand 0, single buffered']
    #allocation3 [shape = 's32[1]{0}', space=sflag, size = 0x4, scoped, tag = 'scoped memory for tpu_custom_call.1']
    #allocation4 [shape = 's32[1]{0}', space=sflag, size = 0x4, scoped, tag = 'scoped memory for tpu_custom_call.1']
    #allocation5 [shape = 'u8[16384]{0}', space=vmem, size = 0x4000, scoped, tag = 'input window, operand 1, single buffered']
    #allocation6 [shape = 's32[1]{0}', space=sflag, size = 0x4, scoped, tag = 'scoped memory for tpu_custom_call.1']
    #allocation7 [shape = 'u8[4096]{0}', space=vmem, size = 0x1000, scoped, tag = 'output window, operand 0, single buffered']
    %8 = vsyncpa [#allocation3], 0
    %9 = vsyncpa [#allocation6], 0
    %10 = vsyncpa [#allocation4], 0
    // Predicated region
    $region2: #{tpu_custom_call.1} parent=1 // pred_check
      _
    $region3: #{tpu_custom_call.1} parent=1 // pred_check_branch
      %12 = sbr.rel (0) target = $region5
    $region4: #{tpu_custom_call.1} parent=1 // pred_region
      %s14 = ssub.s32 128, 128
      %15 = vsyncadd [#allocation3], %s14
      %s17 = sshll.u32 [#allocation2], 4
      %s18 = int_to_ptr.vmem [resolvable:$true] %s17
      %20 = dma.hbm_to_vmem [thread:$0]  %s0, 128, %s18, [#allocation3]
    $region5: #{tpu_custom_call.1} parent=1 // pred_fallthru
      _
    // Predicated region
    $region6: #{tpu_custom_call.1} parent=1 // pred_check
      _
    $region7: #{tpu_custom_call.1} parent=1 // pred_check_branch
      %22 = sbr.rel (0) target = $region9
    $region8: #{tpu_custom_call.1} parent=1 // pred_region
      %s24 = ssub.s32 512, 512
      %25 = vsyncadd [#allocation6], %s24
      %s26 = sshll.u32 [#allocation5], 4
      %s27 = int_to_ptr.vmem [resolvable:$true] %s26
      %32 = dma.hbm_to_vmem [thread:$0]  %s1, 512, %s27, [#allocation6], 128, 128, 8
    $region9: #{tpu_custom_call.1} parent=1 // pred_fallthru
      _
    // Predicated region
    $region10: #{tpu_custom_call.1} parent=1 // pred_check
      _
    $region11: #{tpu_custom_call.1} parent=1 // pred_check_branch
      %34 = sbr.rel (0) target = $region13
    $region12: #{tpu_custom_call.1} parent=1 // pred_region
      _
    $region13: #{tpu_custom_call.1} parent=1 // pred_fallthru
      _
    // Predicated region
    $region14: #{tpu_custom_call.1} parent=1 // pred_check
      _
    $region15: #{tpu_custom_call.1} parent=1 // pred_check_branch
      %36 = sbr.rel (0) target = $region17
    $region16: #{tpu_custom_call.1} parent=1 // pred_region
      %37 = dma.done [#allocation3], 128
    $region17: #{tpu_custom_call.1} parent=1 // pred_fallthru
      _
    // Predicated region
    $region18: #{tpu_custom_call.1} parent=1 // pred_check
      _
    $region19: #{tpu_custom_call.1} parent=1 // pred_check_branch
      %39 = sbr.rel (0) target = $region21
    $region20: #{tpu_custom_call.1} parent=1 // pred_region
      %40 = dma.done [#allocation6], 512
    $region21: #{tpu_custom_call.1} parent=1 // pred_fallthru
      _
    %v41 = vld [vmem:[#allocation2] sm:$0xff]
    %v42 = vld [vmem:[#allocation5] sm:$0xff]
    %v43 = vld [vmem:[#allocation5 + $0x8] sm:$0xff]
    %v44 = vld [vmem:[#allocation5 + $0x10] sm:$0xff]
    %v45 = vld [vmem:[#allocation5 + $0x18] sm:$0xff]
    %v46 = vld [vmem:[%s2] sm:$0x1]
    %v48 = vlaneseq
    %v49 = vshrl.u32 %v48, 7
    %v50 = vsub.s32 0, %v49
    %v51 = vrot.slane %v46, %v50
    %vm53 = vcmask 261120
    %v55 = vsel %vm53, %v41, 0
    %57 = vmatprep.subr.mxu0 0.0
    %58 = vmatpush1.msra.mxu0 0.0
    %59 = vmatprep.subr.mxu0 0.0
    %60 = vmatpush1.msra.mxu0 0.0
    %61 = vmatprep.subr.mxu0 0.0
    %62 = vmatpush1.msra.mxu0 0.0
    %63 = vmatprep.subr.mxu0 0.0
    %64 = vmatpush1.msra.mxu0 0.0
    %65 = vmatprep.subr.mxu0 0.0
    %66 = vmatpush1.msra.mxu0 0.0
    %67 = vmatprep.subr.mxu0 0.0
    %68 = vmatpush1.msra.mxu0 0.0
    %69 = vmatprep.subr.mxu0 0.0
    %70 = vmatpush1.msra.mxu0 0.0
    %71 = vmatprep.subr.mxu0 0.0
    %72 = vmatpush1.msra.mxu0 0.0
    %73 = vmatprep.subr.mxu0 0.0
    %74 = vmatpush1.msra.mxu0 0.0
    %75 = vmatprep.subr.mxu0 0.0
    %76 = vmatpush1.msra.mxu0 0.0
    %77 = vmatprep.subr.mxu0 0.0
    %78 = vmatpush1.msra.mxu0 0.0
    %79 = vmatprep.subr.mxu0 0.0
    %80 = vmatpush1.msra.mxu0 0.0
    %81 = vmatprep.subr.mxu0 0.0
    %82 = vmatpush1.msra.mxu0 %v45
    %83 = vmatprep.subr.mxu0 0.0
    %84 = vmatpush1.msra.mxu0 %v44
    %85 = vmatprep.subr.mxu0 0.0
    %86 = vmatpush1.msra.mxu0 %v43
    %87 = vmatprep.subr.mxu0 0.0
    %88 = vmatpush1.msra.mxu0 %v42
    %89 = vmatprep.subr.mxu0 0.0
    %90 = vmatpush2.msra.mxu0 0.0
    %91 = vmatprep.subr.mxu0 0.0
    %92 = vmatpush2.msra.mxu0 0.0
    %93 = vmatprep.subr.mxu0 0.0
    %94 = vmatpush2.msra.mxu0 0.0
    %95 = vmatprep.subr.mxu0 0.0
    %96 = vmatpush2.msra.mxu0 0.0
    %97 = vmatprep.subr.mxu0 0.0
    %98 = vmatpush2.msra.mxu0 0.0
    %99 = vmatprep.subr.mxu0 0.0
    %100 = vmatpush2.msra.mxu0 0.0
    %101 = vmatprep.subr.mxu0 0.0
    %102 = vmatpush2.msra.mxu0 0.0
    %103 = vmatprep.subr.mxu0 0.0
    %104 = vmatpush2.msra.mxu0 0.0
    %105 = vmatprep.subr.mxu0 0.0
    %106 = vmatpush2.msra.mxu0 0.0
    %107 = vmatprep.subr.mxu0 0.0
    %108 = vmatpush2.msra.mxu0 0.0
    %109 = vmatprep.subr.mxu0 0.0
    %110 = vmatpush2.msra.mxu0 0.0
    %111 = vmatprep.subr.mxu0 0.0
    %112 = vmatpush2.msra.mxu0 0.0
    %113 = vmatprep.subr.mxu0 0.0
    %114 = vmatpush2.msra.mxu0 0.0
    %115 = vmatprep.subr.mxu0 0.0
    %116 = vmatpush2.msra.mxu0 0.0
    %117 = vmatprep.subr.mxu0 0.0
    %118 = vmatpush2.msra.mxu0 0.0
    %119 = vmatprep.subr.mxu0 0.0
    %120 = vmatpush2.msra.mxu0 0.0
    %121 = vmatprep.mubr.f32.mxu0 0.0
    %122 = vmatmul.mubr.f32.gmra.mxu0 %v55
    %v123 = vpop.f32.mrf.mxu0
    %v124 = vadd.f32 %v51, %v123
    %v125 = vpop.f32.mrf.mxu0
    %126 = vdwg.mxu0
    %127 = vmax.xlane.f32.xlu0 %v124
    %v128 = vpop.xlane.xlu0 %127
    %v129 = vsub.f32 %v124, %v128
    %v130 = vmul.f32 %v129, 1.442695
    %v131 = vpow.pop %v130
    %132 = vadd.xlane.f32.xlu0 %v131
    %v133 = vpop.xlane.xlu0 %132
    %v134 = vlog2.pop %v133
    %v135 = vmul.f32 %v134, 0.6931472
    %v136 = vadd.f32 %v128, %v135
    %v137 = vsub.f32 %v124, %v136
    %138 = vst [vmem:[#allocation7] sm:$0xff] %v137
    // Predicated region
    $region22: #{tpu_custom_call.1} parent=1 // pred_check
      _
    $region23: #{tpu_custom_call.1} parent=1 // pred_check_branch
      %140 = sbr.rel (0) target = $region25
    $region24: #{tpu_custom_call.1} parent=1 // pred_region
      %s142 = ssub.s32 128, 128
      %143 = vsyncadd [#allocation4], %s142
      %s145 = sshll.u32 [#allocation7], 4
      %s146 = int_to_ptr.vmem [resolvable:$true] %s145
      %148 = dma.vmem_to_hbm [thread:$0]  %s146, 128, %s3, [#allocation4]
    $region25: #{tpu_custom_call.1} parent=1 // pred_fallthru
      _
    // Predicated region
    $region26: #{tpu_custom_call.1} parent=1 // pred_check
      _
    $region27: #{tpu_custom_call.1} parent=1 // pred_check_branch
      %150 = sbr.rel (0) target = $region29
    $region28: #{tpu_custom_call.1} parent=1 // pred_region
      %151 = dma.done [#allocation4], 128
    $region29: #{tpu_custom_call.1} parent=1 // pred_fallthru
      _
    %152 = vsyncpa [#allocation3], 1
    %153 = vsyncpa [#allocation6], 1
    %154 = vsyncpa [#allocation4], 1

</llo_original>
